<compile_context>
chip_gen: v7x
topology: tpu7x:2x2x1
jax: 0.10.0
libtpu: 0.0.40
codegen_flags: <defaults>
</compile_context>

<pallas_src>
import jax
import jax.numpy as jnp
from jax import lax
from jax.experimental import pallas as pl
from jax.experimental.pallas import tpu as pltpu


def _lstm_fc_softmax_kernel(x_ref,      # (S, B, E)  embedded tokens, time-major
                            wih_ref,    # (E, 4H)    input->gates, [i,f,o,g] cols
                            whh_ref,    # (H, 4H)    hidden->gates, [i,f,o,g] cols
                            b_ref,      # (1, 4H)    b_ih + b_hh, [i,f,o,g]
                            wfc_ref,    # (H, O)     fc weight^T
                            bfc_ref,    # (1, O)     fc bias
                            out_ref,    # (B, O)     softmax probabilities
                            gx_ref):    # scratch (S, B, 4H)  precomputed x-gates
    S, B, E = x_ref.shape
    H = whh_ref.shape[0]

    # ---- hoisted input->gates: one well-filled MXU matmul for all S steps ----
    x_all = x_ref[...].reshape(S * B, E)                          # (S*B, E)
    gx = jnp.dot(x_all, wih_ref[...],
                 preferred_element_type=jnp.float32) + b_ref[...]  # (S*B, 4H)
    gx_ref[...] = gx.reshape(S, B, 4 * H)

    # h_0 = c_0 = 0  (PyTorch default when no (h0, c0) is given)
    h0 = jnp.zeros((B, H), jnp.float32)
    c0 = jnp.zeros((B, H), jnp.float32)

    def step(t, carry):
        h, c = carry
        gates = gx_ref[t] + jnp.dot(h, whh_ref[...],
                                    preferred_element_type=jnp.float32)  # (B, 4H)
        # permuted gate order: [i | f | o | g]
        sig = jax.nn.sigmoid(gates[:, 0:3 * H])   # one EUP push for i, f, o
        g_g = jnp.tanh(gates[:, 3 * H:4 * H])     # one EUP push for g
        i_g = sig[:, 0 * H:1 * H]
        f_g = sig[:, 1 * H:2 * H]
        o_g = sig[:, 2 * H:3 * H]
        c_new = f_g * c + i_g * g_g
        h_new = o_g * jnp.tanh(c_new)
        return (h_new, c_new)

    h_fin, _ = lax.fori_loop(0, S, step, (h0, c0), unroll=True)

    # fc + softmax over dim=1 (the output_size axis)
    logits = (jnp.dot(h_fin, wfc_ref[...], preferred_element_type=jnp.float32)
              + bfc_ref[...])                                     # (B, O)
    m = jnp.max(logits, axis=1, keepdims=True)
    e = jnp.exp(logits - m)
    denom = jnp.sum(e, axis=1, keepdims=True)
    out_ref[...] = e * pl.reciprocal(denom, approx=False)


def _permute_ifgo_to_ifog(w, H):
    """Reorder the packed-gate axis (axis 0) from PyTorch [i,f,g,o] to [i,f,o,g]."""
    i, f, g, o = (w[0 * H:1 * H], w[1 * H:2 * H],
                  w[2 * H:3 * H], w[3 * H:4 * H])
    return jnp.concatenate([i, f, o, g], axis=0)


@jax.jit
def py_model_forward(tokens, emb_table, w_ih, w_hh, b_ih, b_hh, w_fc, b_fc):
    """tokens: (B, S) int32. Returns (B, output_size) float32 softmax probs."""
    B, S = tokens.shape
    E = emb_table.shape[1]
    H = w_hh.shape[1]          # w_hh is (4H, H) PyTorch layout
    O = w_fc.shape[0]          # w_fc is (O, H)  PyTorch layout

    # ---- glue (plain JAX): embedding gather + layout / weight prep ----
    x_emb = jnp.take(emb_table, tokens, axis=0)          # (B, S, E)
    x_tm = jnp.transpose(x_emb, (1, 0, 2))               # (S, B, E) time-major

    wih_t = _permute_ifgo_to_ifog(w_ih, H).T             # (E, 4H), [i,f,o,g]
    whh_t = _permute_ifgo_to_ifog(w_hh, H).T             # (H, 4H), [i,f,o,g]
    b = _permute_ifgo_to_ifog(b_ih + b_hh, H).reshape(1, 4 * H)
    wfc_t = w_fc.T                                       # (H, O)
    bfc = b_fc.reshape(1, O)                             # (1, O)

    vmem = pl.BlockSpec(memory_space=pltpu.MemorySpace.VMEM)
    out = pl.pallas_call(
        _lstm_fc_softmax_kernel,
        out_shape=jax.ShapeDtypeStruct((B, O), jnp.float32),
        in_specs=[vmem] * 6,
        out_specs=vmem,
        scratch_shapes=[
            pltpu.VMEM((S, B, 4 * H), jnp.float32),      # precomputed x-gates
        ],
    )(x_tm, wih_t, whh_t, b, wfc_t, bfc)
    return out


def _reference_forward(tokens, emb_table, w_ih, w_hh, b_ih, b_hh, w_fc, b_fc):
    """Pure-JAX reference mirroring PyTorch semantics, for a sanity check."""
    x = jnp.take(emb_table, tokens, axis=0)              # (B, S, E)
    B, S, E = x.shape
    H = w_hh.shape[1]

    def cell(carry, x_t):
        h, c = carry
        gates = x_t @ w_ih.T + b_ih + h @ w_hh.T + b_hh
        i = jax.nn.sigmoid(gates[:, 0 * H:1 * H])
        f = jax.nn.sigmoid(gates[:, 1 * H:2 * H])
        g = jnp.tanh(gates[:, 2 * H:3 * H])
        o = jax.nn.sigmoid(gates[:, 3 * H:4 * H])
        c = f * c + i * g
        h = o * jnp.tanh(c)
        return (h, c), None

    h0 = jnp.zeros((B, H), jnp.float32)
    c0 = jnp.zeros((B, H), jnp.float32)
    (h, _), _ = lax.scan(cell, (h0, c0), jnp.transpose(x, (1, 0, 2)))
    logits = h @ w_fc.T + b_fc
    return jax.nn.softmax(logits, axis=1)


if __name__ == "__main__":
    # Small, forward-consistent shapes.
    vocab_size, embedding_dim, lstm_hidden_dim, output_size = 32, 16, 32, 8
    batch, seq = 8, 8

    key = jax.random.PRNGKey(0)
    keys = jax.random.split(key, 8)

    scale = 1.0 / jnp.sqrt(jnp.float32(lstm_hidden_dim))
    emb_table = jax.random.normal(keys[0], (vocab_size, embedding_dim), jnp.float32)
    w_ih = jax.random.uniform(keys[1], (4 * lstm_hidden_dim, embedding_dim),
                              jnp.float32, -scale, scale)
    w_hh = jax.random.uniform(keys[2], (4 * lstm_hidden_dim, lstm_hidden_dim),
                              jnp.float32, -scale, scale)
    b_ih = jax.random.uniform(keys[3], (4 * lstm_hidden_dim,), jnp.float32, -scale, scale)
    b_hh = jax.random.uniform(keys[4], (4 * lstm_hidden_dim,), jnp.float32, -scale, scale)
    w_fc = jax.random.uniform(keys[5], (output_size, lstm_hidden_dim),
                              jnp.float32, -scale, scale)
    b_fc = jax.random.uniform(keys[6], (output_size,), jnp.float32, -scale, scale)

    tokens = jax.random.randint(keys[7], (batch, seq), 0, vocab_size, jnp.int32)

    out = py_model_forward(tokens, emb_table, w_ih, w_hh, b_ih, b_hh, w_fc, b_fc)
    out = jax.block_until_ready(out)

    ref = _reference_forward(tokens, emb_table, w_ih, w_hh, b_ih, b_hh, w_fc, b_fc)
    assert out.shape == (batch, output_size)
    assert jnp.allclose(out, ref, atol=1e-5, rtol=1e-5), "mismatch vs JAX reference"

    print("KERNEL_OK")
</pallas_src>

<mosaic_0001>
module attributes {stable_mosaic.version = 11 : i64} {
  func.func @_lstm_fc_softmax_kernel(%arg0: memref<8x8x16xf32, #tpu.memory_space<vmem>>, %arg1: memref<16x128xf32, #tpu.memory_space<vmem>>, %arg2: memref<32x128xf32, #tpu.memory_space<vmem>>, %arg3: memref<1x128xf32, #tpu.memory_space<vmem>>, %arg4: memref<32x8xf32, #tpu.memory_space<vmem>>, %arg5: memref<1x8xf32, #tpu.memory_space<vmem>>, %arg6: memref<8x8xf32, #tpu.memory_space<vmem>>, %arg7: memref<8x8x128xf32, #tpu.memory_space<vmem>>) attributes {dimension_semantics = [], scalar_prefetch = 0 : i64, scratch_operands = 1 : i64, tpu.core_type = #tpu.core_type<tc>} {
    %c0 = arith.constant 0 : index
    %c0_0 = arith.constant 0 : index
    %c0_1 = arith.constant 0 : index
    %0 = vector.load %arg0[%c0, %c0_0, %c0_1] : memref<8x8x16xf32, #tpu.memory_space<vmem>>, vector<8x8x16xf32>
    %1 = vector.shape_cast %0 : vector<8x8x16xf32> to vector<64x16xf32>
    %c0_2 = arith.constant 0 : index
    %c0_3 = arith.constant 0 : index
    %2 = vector.load %arg1[%c0_2, %c0_3] : memref<16x128xf32, #tpu.memory_space<vmem>>, vector<16x128xf32>
    %cst = arith.constant dense<0.000000e+00> : vector<64x128xf32>
    %3 = tpu.matmul %1, %2, %cst {dimension_numbers = #tpu.dot_dimension_numbers<[1], [0], [0], [1], [0, 0, 1, 1], [], []>} : vector<64x16xf32>, vector<16x128xf32>, vector<64x128xf32> -> vector<64x128xf32>
    %c0_4 = arith.constant 0 : index
    %c0_5 = arith.constant 0 : index
    %4 = vector.load %arg3[%c0_4, %c0_5] : memref<1x128xf32, #tpu.memory_space<vmem>>, vector<1x128xf32>
    %5 = vector.broadcast %4 : vector<1x128xf32> to vector<64x128xf32>
    %6 = arith.addf %3, %5 : vector<64x128xf32>
    %7 = vector.shape_cast %6 : vector<64x128xf32> to vector<8x8x128xf32>
    %c0_6 = arith.constant 0 : index
    %c0_7 = arith.constant 0 : index
    %c0_8 = arith.constant 0 : index
    %8 = vector.load %arg7[%c0_6, %c0_7, %c0_8] : memref<8x8x128xf32, #tpu.memory_space<vmem>>, vector<8x8x128xf32>
    tpu.vector_store %arg7[%c0_6, %c0_7, %c0_8], %7 {strides = array<i32>} : memref<8x8x128xf32, #tpu.memory_space<vmem>>, vector<8x8x128xf32>,
    %cst_9 = arith.constant 0.000000e+00 : f32
    %9 = vector.broadcast %cst_9 : f32 to vector<8x32xf32>
    %cst_10 = arith.constant 0.000000e+00 : f32
    %10 = vector.broadcast %cst_10 : f32 to vector<8x32xf32>
    %c0_i32 = arith.constant 0 : i32
    %11 = arith.index_cast %c0_i32 : i32 to index
    %c0_11 = arith.constant 0 : index
    %c0_12 = arith.constant 0 : index
    %12 = vector.load %arg7[%11, %c0_11, %c0_12] : memref<8x8x128xf32, #tpu.memory_space<vmem>>, vector<1x8x128xf32>
    %13 = vector.shape_cast %12 : vector<1x8x128xf32> to vector<8x128xf32>
    %c0_13 = arith.constant 0 : index
    %c0_14 = arith.constant 0 : index
    %14 = vector.load %arg2[%c0_13, %c0_14] : memref<32x128xf32, #tpu.memory_space<vmem>>, vector<32x128xf32>
    %cst_15 = arith.constant dense<0.000000e+00> : vector<8x128xf32>
    %15 = tpu.matmul %9, %14, %cst_15 {dimension_numbers = #tpu.dot_dimension_numbers<[1], [0], [0], [1], [0, 0, 1, 1], [], []>} : vector<8x32xf32>, vector<32x128xf32>, vector<8x128xf32> -> vector<8x128xf32>
    %16 = arith.addf %13, %15 : vector<8x128xf32>
    %17 = vector.extract_strided_slice %16 {offsets = [0, 0], sizes = [8, 96], strides = [1, 1]} : vector<8x128xf32> to vector<8x96xf32>
    %18 = arith.negf %17 : vector<8x96xf32>
    %19 = math.exp %18 : vector<8x96xf32>
    %cst_16 = arith.constant 1.000000e+00 : f32
    %20 = vector.broadcast %cst_16 : f32 to vector<8x96xf32>
    %21 = arith.addf %20, %19 : vector<8x96xf32>
    %22 = arith.divf %20, %21 : vector<8x96xf32>
    %23 = vector.extract_strided_slice %16 {offsets = [0, 96], sizes = [8, 32], strides = [1, 1]} : vector<8x128xf32> to vector<8x32xf32>
    %24 = math.tanh %23 : vector<8x32xf32>
    %25 = vector.extract_strided_slice %22 {offsets = [0, 0], sizes = [8, 32], strides = [1, 1]} : vector<8x96xf32> to vector<8x32xf32>
    %26 = vector.extract_strided_slice %22 {offsets = [0, 32], sizes = [8, 32], strides = [1, 1]} : vector<8x96xf32> to vector<8x32xf32>
    %27 = vector.extract_strided_slice %22 {offsets = [0, 64], sizes = [8, 32], strides = [1, 1]} : vector<8x96xf32> to vector<8x32xf32>
    %28 = arith.mulf %26, %10 : vector<8x32xf32>
    %29 = arith.mulf %25, %24 : vector<8x32xf32>
    %30 = arith.addf %28, %29 : vector<8x32xf32>
    %31 = math.tanh %30 : vector<8x32xf32>
    %32 = arith.mulf %27, %31 : vector<8x32xf32>
    %c1_i32 = arith.constant 1 : i32
    %33 = arith.index_cast %c1_i32 : i32 to index
    %c0_17 = arith.constant 0 : index
    %c0_18 = arith.constant 0 : index
    %34 = vector.load %arg7[%33, %c0_17, %c0_18] : memref<8x8x128xf32, #tpu.memory_space<vmem>>, vector<1x8x128xf32>
    %35 = vector.shape_cast %34 : vector<1x8x128xf32> to vector<8x128xf32>
    %c0_19 = arith.constant 0 : index
    %c0_20 = arith.constant 0 : index
    %36 = vector.load %arg2[%c0_19, %c0_20] : memref<32x128xf32, #tpu.memory_space<vmem>>, vector<32x128xf32>
    %cst_21 = arith.constant dense<0.000000e+00> : vector<8x128xf32>
    %37 = tpu.matmul %32, %36, %cst_21 {dimension_numbers = #tpu.dot_dimension_numbers<[1], [0], [0], [1], [0, 0, 1, 1], [], []>} : vector<8x32xf32>, vector<32x128xf32>, vector<8x128xf32> -> vector<8x128xf32>
    %38 = arith.addf %35, %37 : vector<8x128xf32>
    %39 = vector.extract_strided_slice %38 {offsets = [0, 0], sizes = [8, 96], strides = [1, 1]} : vector<8x128xf32> to vector<8x96xf32>
    %40 = arith.negf %39 : vector<8x96xf32>
    %41 = math.exp %40 : vector<8x96xf32>
    %cst_22 = arith.constant 1.000000e+00 : f32
    %42 = vector.broadcast %cst_22 : f32 to vector<8x96xf32>
    %43 = arith.addf %42, %41 : vector<8x96xf32>
    %44 = arith.divf %42, %43 : vector<8x96xf32>
    %45 = vector.extract_strided_slice %38 {offsets = [0, 96], sizes = [8, 32], strides = [1, 1]} : vector<8x128xf32> to vector<8x32xf32>
    %46 = math.tanh %45 : vector<8x32xf32>
    %47 = vector.extract_strided_slice %44 {offsets = [0, 0], sizes = [8, 32], strides = [1, 1]} : vector<8x96xf32> to vector<8x32xf32>
    %48 = vector.extract_strided_slice %44 {offsets = [0, 32], sizes = [8, 32], strides = [1, 1]} : vector<8x96xf32> to vector<8x32xf32>
    %49 = vector.extract_strided_slice %44 {offsets = [0, 64], sizes = [8, 32], strides = [1, 1]} : vector<8x96xf32> to vector<8x32xf32>
    %50 = arith.mulf %48, %30 : vector<8x32xf32>
    %51 = arith.mulf %47, %46 : vector<8x32xf32>
    %52 = arith.addf %50, %51 : vector<8x32xf32>
    %53 = math.tanh %52 : vector<8x32xf32>
    %54 = arith.mulf %49, %53 : vector<8x32xf32>
    %c2_i32 = arith.constant 2 : i32
    %55 = arith.index_cast %c2_i32 : i32 to index
    %c0_23 = arith.constant 0 : index
    %c0_24 = arith.constant 0 : index
    %56 = vector.load %arg7[%55, %c0_23, %c0_24] : memref<8x8x128xf32, #tpu.memory_space<vmem>>, vector<1x8x128xf32>
    %57 = vector.shape_cast %56 : vector<1x8x128xf32> to vector<8x128xf32>
    %c0_25 = arith.constant 0 : index
    %c0_26 = arith.constant 0 : index
    %58 = vector.load %arg2[%c0_25, %c0_26] : memref<32x128xf32, #tpu.memory_space<vmem>>, vector<32x128xf32>
    %cst_27 = arith.constant dense<0.000000e+00> : vector<8x128xf32>
    %59 = tpu.matmul %54, %58, %cst_27 {dimension_numbers = #tpu.dot_dimension_numbers<[1], [0], [0], [1], [0, 0, 1, 1], [], []>} : vector<8x32xf32>, vector<32x128xf32>, vector<8x128xf32> -> vector<8x128xf32>
    %60 = arith.addf %57, %59 : vector<8x128xf32>
    %61 = vector.extract_strided_slice %60 {offsets = [0, 0], sizes = [8, 96], strides = [1, 1]} : vector<8x128xf32> to vector<8x96xf32>
    %62 = arith.negf %61 : vector<8x96xf32>
    %63 = math.exp %62 : vector<8x96xf32>
    %cst_28 = arith.constant 1.000000e+00 : f32
    %64 = vector.broadcast %cst_28 : f32 to vector<8x96xf32>
    %65 = arith.addf %64, %63 : vector<8x96xf32>
    %66 = arith.divf %64, %65 : vector<8x96xf32>
    %67 = vector.extract_strided_slice %60 {offsets = [0, 96], sizes = [8, 32], strides = [1, 1]} : vector<8x128xf32> to vector<8x32xf32>
    %68 = math.tanh %67 : vector<8x32xf32>
    %69 = vector.extract_strided_slice %66 {offsets = [0, 0], sizes = [8, 32], strides = [1, 1]} : vector<8x96xf32> to vector<8x32xf32>
    %70 = vector.extract_strided_slice %66 {offsets = [0, 32], sizes = [8, 32], strides = [1, 1]} : vector<8x96xf32> to vector<8x32xf32>
    %71 = vector.extract_strided_slice %66 {offsets = [0, 64], sizes = [8, 32], strides = [1, 1]} : vector<8x96xf32> to vector<8x32xf32>
    %72 = arith.mulf %70, %52 : vector<8x32xf32>
    %73 = arith.mulf %69, %68 : vector<8x32xf32>
    %74 = arith.addf %72, %73 : vector<8x32xf32>
    %75 = math.tanh %74 : vector<8x32xf32>
    %76 = arith.mulf %71, %75 : vector<8x32xf32>
    %c3_i32 = arith.constant 3 : i32
    %77 = arith.index_cast %c3_i32 : i32 to index
    %c0_29 = arith.constant 0 : index
    %c0_30 = arith.constant 0 : index
    %78 = vector.load %arg7[%77, %c0_29, %c0_30] : memref<8x8x128xf32, #tpu.memory_space<vmem>>, vector<1x8x128xf32>
    %79 = vector.shape_cast %78 : vector<1x8x128xf32> to vector<8x128xf32>
    %c0_31 = arith.constant 0 : index
    %c0_32 = arith.constant 0 : index
    %80 = vector.load %arg2[%c0_31, %c0_32] : memref<32x128xf32, #tpu.memory_space<vmem>>, vector<32x128xf32>
    %cst_33 = arith.constant dense<0.000000e+00> : vector<8x128xf32>
    %81 = tpu.matmul %76, %80, %cst_33 {dimension_numbers = #tpu.dot_dimension_numbers<[1], [0], [0], [1], [0, 0, 1, 1], [], []>} : vector<8x32xf32>, vector<32x128xf32>, vector<8x128xf32> -> vector<8x128xf32>
    %82 = arith.addf %79, %81 : vector<8x128xf32>
    %83 = vector.extract_strided_slice %82 {offsets = [0, 0], sizes = [8, 96], strides = [1, 1]} : vector<8x128xf32> to vector<8x96xf32>
    %84 = arith.negf %83 : vector<8x96xf32>
    %85 = math.exp %84 : vector<8x96xf32>
    %cst_34 = arith.constant 1.000000e+00 : f32
    %86 = vector.broadcast %cst_34 : f32 to vector<8x96xf32>
    %87 = arith.addf %86, %85 : vector<8x96xf32>
    %88 = arith.divf %86, %87 : vector<8x96xf32>
    %89 = vector.extract_strided_slice %82 {offsets = [0, 96], sizes = [8, 32], strides = [1, 1]} : vector<8x128xf32> to vector<8x32xf32>
    %90 = math.tanh %89 : vector<8x32xf32>
    %91 = vector.extract_strided_slice %88 {offsets = [0, 0], sizes = [8, 32], strides = [1, 1]} : vector<8x96xf32> to vector<8x32xf32>
    %92 = vector.extract_strided_slice %88 {offsets = [0, 32], sizes = [8, 32], strides = [1, 1]} : vector<8x96xf32> to vector<8x32xf32>
    %93 = vector.extract_strided_slice %88 {offsets = [0, 64], sizes = [8, 32], strides = [1, 1]} : vector<8x96xf32> to vector<8x32xf32>
    %94 = arith.mulf %92, %74 : vector<8x32xf32>
    %95 = arith.mulf %91, %90 : vector<8x32xf32>
    %96 = arith.addf %94, %95 : vector<8x32xf32>
    %97 = math.tanh %96 : vector<8x32xf32>
    %98 = arith.mulf %93, %97 : vector<8x32xf32>
    %c4_i32 = arith.constant 4 : i32
    %99 = arith.index_cast %c4_i32 : i32 to index
    %c0_35 = arith.constant 0 : index
    %c0_36 = arith.constant 0 : index
    %100 = vector.load %arg7[%99, %c0_35, %c0_36] : memref<8x8x128xf32, #tpu.memory_space<vmem>>, vector<1x8x128xf32>
    %101 = vector.shape_cast %100 : vector<1x8x128xf32> to vector<8x128xf32>
    %c0_37 = arith.constant 0 : index
    %c0_38 = arith.constant 0 : index
    %102 = vector.load %arg2[%c0_37, %c0_38] : memref<32x128xf32, #tpu.memory_space<vmem>>, vector<32x128xf32>
    %cst_39 = arith.constant dense<0.000000e+00> : vector<8x128xf32>
    %103 = tpu.matmul %98, %102, %cst_39 {dimension_numbers = #tpu.dot_dimension_numbers<[1], [0], [0], [1], [0, 0, 1, 1], [], []>} : vector<8x32xf32>, vector<32x128xf32>, vector<8x128xf32> -> vector<8x128xf32>
    %104 = arith.addf %101, %103 : vector<8x128xf32>
    %105 = vector.extract_strided_slice %104 {offsets = [0, 0], sizes = [8, 96], strides = [1, 1]} : vector<8x128xf32> to vector<8x96xf32>
    %106 = arith.negf %105 : vector<8x96xf32>
    %107 = math.exp %106 : vector<8x96xf32>
    %cst_40 = arith.constant 1.000000e+00 : f32
    %108 = vector.broadcast %cst_40 : f32 to vector<8x96xf32>
    %109 = arith.addf %108, %107 : vector<8x96xf32>
    %110 = arith.divf %108, %109 : vector<8x96xf32>
    %111 = vector.extract_strided_slice %104 {offsets = [0, 96], sizes = [8, 32], strides = [1, 1]} : vector<8x128xf32> to vector<8x32xf32>
    %112 = math.tanh %111 : vector<8x32xf32>
    %113 = vector.extract_strided_slice %110 {offsets = [0, 0], sizes = [8, 32], strides = [1, 1]} : vector<8x96xf32> to vector<8x32xf32>
    %114 = vector.extract_strided_slice %110 {offsets = [0, 32], sizes = [8, 32], strides = [1, 1]} : vector<8x96xf32> to vector<8x32xf32>
    %115 = vector.extract_strided_slice %110 {offsets = [0, 64], sizes = [8, 32], strides = [1, 1]} : vector<8x96xf32> to vector<8x32xf32>
    %116 = arith.mulf %114, %96 : vector<8x32xf32>
    %117 = arith.mulf %113, %112 : vector<8x32xf32>
    %118 = arith.addf %116, %117 : vector<8x32xf32>
    %119 = math.tanh %118 : vector<8x32xf32>
    %120 = arith.mulf %115, %119 : vector<8x32xf32>
    %c5_i32 = arith.constant 5 : i32
    %121 = arith.index_cast %c5_i32 : i32 to index
    %c0_41 = arith.constant 0 : index
    %c0_42 = arith.constant 0 : index
    %122 = vector.load %arg7[%121, %c0_41, %c0_42] : memref<8x8x128xf32, #tpu.memory_space<vmem>>, vector<1x8x128xf32>
    %123 = vector.shape_cast %122 : vector<1x8x128xf32> to vector<8x128xf32>
    %c0_43 = arith.constant 0 : index
    %c0_44 = arith.constant 0 : index
    %124 = vector.load %arg2[%c0_43, %c0_44] : memref<32x128xf32, #tpu.memory_space<vmem>>, vector<32x128xf32>
    %cst_45 = arith.constant dense<0.000000e+00> : vector<8x128xf32>
    %125 = tpu.matmul %120, %124, %cst_45 {dimension_numbers = #tpu.dot_dimension_numbers<[1], [0], [0], [1], [0, 0, 1, 1], [], []>} : vector<8x32xf32>, vector<32x128xf32>, vector<8x128xf32> -> vector<8x128xf32>
    %126 = arith.addf %123, %125 : vector<8x128xf32>
    %127 = vector.extract_strided_slice %126 {offsets = [0, 0], sizes = [8, 96], strides = [1, 1]} : vector<8x128xf32> to vector<8x96xf32>
    %128 = arith.negf %127 : vector<8x96xf32>
    %129 = math.exp %128 : vector<8x96xf32>
    %cst_46 = arith.constant 1.000000e+00 : f32
    %130 = vector.broadcast %cst_46 : f32 to vector<8x96xf32>
    %131 = arith.addf %130, %129 : vector<8x96xf32>
    %132 = arith.divf %130, %131 : vector<8x96xf32>
    %133 = vector.extract_strided_slice %126 {offsets = [0, 96], sizes = [8, 32], strides = [1, 1]} : vector<8x128xf32> to vector<8x32xf32>
    %134 = math.tanh %133 : vector<8x32xf32>
    %135 = vector.extract_strided_slice %132 {offsets = [0, 0], sizes = [8, 32], strides = [1, 1]} : vector<8x96xf32> to vector<8x32xf32>
    %136 = vector.extract_strided_slice %132 {offsets = [0, 32], sizes = [8, 32], strides = [1, 1]} : vector<8x96xf32> to vector<8x32xf32>
    %137 = vector.extract_strided_slice %132 {offsets = [0, 64], sizes = [8, 32], strides = [1, 1]} : vector<8x96xf32> to vector<8x32xf32>
    %138 = arith.mulf %136, %118 : vector<8x32xf32>
    %139 = arith.mulf %135, %134 : vector<8x32xf32>
    %140 = arith.addf %138, %139 : vector<8x32xf32>
    %141 = math.tanh %140 : vector<8x32xf32>
    %142 = arith.mulf %137, %141 : vector<8x32xf32>
    %c6_i32 = arith.constant 6 : i32
    %143 = arith.index_cast %c6_i32 : i32 to index
    %c0_47 = arith.constant 0 : index
    %c0_48 = arith.constant 0 : index
    %144 = vector.load %arg7[%143, %c0_47, %c0_48] : memref<8x8x128xf32, #tpu.memory_space<vmem>>, vector<1x8x128xf32>
    %145 = vector.shape_cast %144 : vector<1x8x128xf32> to vector<8x128xf32>
    %c0_49 = arith.constant 0 : index
    %c0_50 = arith.constant 0 : index
    %146 = vector.load %arg2[%c0_49, %c0_50] : memref<32x128xf32, #tpu.memory_space<vmem>>, vector<32x128xf32>
    %cst_51 = arith.constant dense<0.000000e+00> : vector<8x128xf32>
    %147 = tpu.matmul %142, %146, %cst_51 {dimension_numbers = #tpu.dot_dimension_numbers<[1], [0], [0], [1], [0, 0, 1, 1], [], []>} : vector<8x32xf32>, vector<32x128xf32>, vector<8x128xf32> -> vector<8x128xf32>
    %148 = arith.addf %145, %147 : vector<8x128xf32>
    %149 = vector.extract_strided_slice %148 {offsets = [0, 0], sizes = [8, 96], strides = [1, 1]} : vector<8x128xf32> to vector<8x96xf32>
    %150 = arith.negf %149 : vector<8x96xf32>
    %151 = math.exp %150 : vector<8x96xf32>
    %cst_52 = arith.constant 1.000000e+00 : f32
    %152 = vector.broadcast %cst_52 : f32 to vector<8x96xf32>
    %153 = arith.addf %152, %151 : vector<8x96xf32>
    %154 = arith.divf %152, %153 : vector<8x96xf32>
    %155 = vector.extract_strided_slice %148 {offsets = [0, 96], sizes = [8, 32], strides = [1, 1]} : vector<8x128xf32> to vector<8x32xf32>
    %156 = math.tanh %155 : vector<8x32xf32>
    %157 = vector.extract_strided_slice %154 {offsets = [0, 0], sizes = [8, 32], strides = [1, 1]} : vector<8x96xf32> to vector<8x32xf32>
    %158 = vector.extract_strided_slice %154 {offsets = [0, 32], sizes = [8, 32], strides = [1, 1]} : vector<8x96xf32> to vector<8x32xf32>
    %159 = vector.extract_strided_slice %154 {offsets = [0, 64], sizes = [8, 32], strides = [1, 1]} : vector<8x96xf32> to vector<8x32xf32>
    %160 = arith.mulf %158, %140 : vector<8x32xf32>
    %161 = arith.mulf %157, %156 : vector<8x32xf32>
    %162 = arith.addf %160, %161 : vector<8x32xf32>
    %163 = math.tanh %162 : vector<8x32xf32>
    %164 = arith.mulf %159, %163 : vector<8x32xf32>
    %c7_i32 = arith.constant 7 : i32
    %165 = arith.index_cast %c7_i32 : i32 to index
    %c0_53 = arith.constant 0 : index
    %c0_54 = arith.constant 0 : index
    %166 = vector.load %arg7[%165, %c0_53, %c0_54] : memref<8x8x128xf32, #tpu.memory_space<vmem>>, vector<1x8x128xf32>
    %167 = vector.shape_cast %166 : vector<1x8x128xf32> to vector<8x128xf32>
    %c0_55 = arith.constant 0 : index
    %c0_56 = arith.constant 0 : index
    %168 = vector.load %arg2[%c0_55, %c0_56] : memref<32x128xf32, #tpu.memory_space<vmem>>, vector<32x128xf32>
    %cst_57 = arith.constant dense<0.000000e+00> : vector<8x128xf32>
    %169 = tpu.matmul %164, %168, %cst_57 {dimension_numbers = #tpu.dot_dimension_numbers<[1], [0], [0], [1], [0, 0, 1, 1], [], []>} : vector<8x32xf32>, vector<32x128xf32>, vector<8x128xf32> -> vector<8x128xf32>
    %170 = arith.addf %167, %169 : vector<8x128xf32>
    %171 = vector.extract_strided_slice %170 {offsets = [0, 0], sizes = [8, 96], strides = [1, 1]} : vector<8x128xf32> to vector<8x96xf32>
    %172 = arith.negf %171 : vector<8x96xf32>
    %173 = math.exp %172 : vector<8x96xf32>
    %cst_58 = arith.constant 1.000000e+00 : f32
    %174 = vector.broadcast %cst_58 : f32 to vector<8x96xf32>
    %175 = arith.addf %174, %173 : vector<8x96xf32>
    %176 = arith.divf %174, %175 : vector<8x96xf32>
    %177 = vector.extract_strided_slice %170 {offsets = [0, 96], sizes = [8, 32], strides = [1, 1]} : vector<8x128xf32> to vector<8x32xf32>
    %178 = math.tanh %177 : vector<8x32xf32>
    %179 = vector.extract_strided_slice %176 {offsets = [0, 0], sizes = [8, 32], strides = [1, 1]} : vector<8x96xf32> to vector<8x32xf32>
    %180 = vector.extract_strided_slice %176 {offsets = [0, 32], sizes = [8, 32], strides = [1, 1]} : vector<8x96xf32> to vector<8x32xf32>
    %181 = vector.extract_strided_slice %176 {offsets = [0, 64], sizes = [8, 32], strides = [1, 1]} : vector<8x96xf32> to vector<8x32xf32>
    %182 = arith.mulf %180, %162 : vector<8x32xf32>
    %183 = arith.mulf %179, %178 : vector<8x32xf32>
    %184 = arith.addf %182, %183 : vector<8x32xf32>
    %185 = math.tanh %184 : vector<8x32xf32>
    %186 = arith.mulf %181, %185 : vector<8x32xf32>
    %c8_i32 = arith.constant 8 : i32
    %c0_59 = arith.constant 0 : index
    %c0_60 = arith.constant 0 : index
    %187 = vector.load %arg4[%c0_59, %c0_60] : memref<32x8xf32, #tpu.memory_space<vmem>>, vector<32x8xf32>
    %cst_61 = arith.constant dense<0.000000e+00> : vector<8x8xf32>
    %188 = tpu.matmul %186, %187, %cst_61 {dimension_numbers = #tpu.dot_dimension_numbers<[1], [0], [0], [1], [0, 0, 1, 1], [], []>} : vector<8x32xf32>, vector<32x8xf32>, vector<8x8xf32> -> vector<8x8xf32>
    %c0_62 = arith.constant 0 : index
    %c0_63 = arith.constant 0 : index
    %189 = vector.load %arg5[%c0_62, %c0_63] : memref<1x8xf32, #tpu.memory_space<vmem>>, vector<1x8xf32>
    %190 = vector.broadcast %189 : vector<1x8xf32> to vector<8x8xf32>
    %191 = arith.addf %188, %190 : vector<8x8xf32>
    %cst_64 = arith.constant dense<0xFF800000> : vector<8xf32>
    %192 = vector.multi_reduction <maximumf>, %191, %cst_64 [1] : vector<8x8xf32> to vector<8xf32>
    %193 = vector.shape_cast %192 : vector<8xf32> to vector<8x1xf32>
    %194 = vector.broadcast %193 : vector<8x1xf32> to vector<8x8xf32>
    %195 = arith.subf %191, %194 : vector<8x8xf32>
    %196 = math.exp %195 : vector<8x8xf32>
    %cst_65 = arith.constant dense<0.000000e+00> : vector<8xf32>
    %197 = vector.multi_reduction <add>, %196, %cst_65 [1] : vector<8x8xf32> to vector<8xf32>
    %198 = vector.shape_cast %197 : vector<8xf32> to vector<8x1xf32>
    %199 = tpu.reciprocal %198 : vector<8x1xf32> -> vector<8x1xf32>
    %200 = vector.broadcast %199 : vector<8x1xf32> to vector<8x8xf32>
    %201 = arith.mulf %196, %200 : vector<8x8xf32>
    %c0_66 = arith.constant 0 : index
    %c0_67 = arith.constant 0 : index
    %202 = vector.load %arg6[%c0_66, %c0_67] : memref<8x8xf32, #tpu.memory_space<vmem>>, vector<8x8xf32>
    tpu.vector_store %arg6[%c0_66, %c0_67], %201 {strides = array<i32>} : memref<8x8xf32, #tpu.memory_space<vmem>>, vector<8x8xf32>,
    return
  }
}

</mosaic_0001>

<llo_original>
// kernel: py_model_forward.1
$region0: #{py_model_forward.1}
  #allocation0 [shape = 'u32[]', space=smem, size = 0x4, offset = 0x4, fixed_abs, tag = 'smem constant byte address 0x4 - core index']
  #allocation1 [shape = 'u32[144,128]{1,0:T(1,128)}', space=vmem, size = 0x12000, scoped, tag = 'internal scratch']
  #allocation2 [shape = 'f32[8,8,128]{2,1,0:T(8,128)}', space=vmem, size = 0x8000, scoped, tag = 'scratch operand']
  %s0 = inlined_call_operand.vmem [shape: f32[8,8,16], index: 0, kind: input, shape index: {}]
  %s1 = inlined_call_operand.vmem [shape: f32[16,128], index: 1, kind: input, shape index: {}]
  %s2 = inlined_call_operand.vmem [shape: f32[32,128], index: 2, kind: input, shape index: {}]
  %s3 = inlined_call_operand.vmem [shape: f32[1,128], index: 3, kind: input, shape index: {}]
  %s4 = inlined_call_operand.vmem [shape: f32[32,8], index: 4, kind: input, shape index: {}]
  %s5 = inlined_call_operand.vmem [shape: f32[1,8], index: 5, kind: input, shape index: {}]
  %s6 = inlined_call_operand.hbm [shape: f32[8,8], index: 6, kind: output, shape index: {}]
  %s7 = sld [smem:[#allocation0]]
  $region34: #{py_model_forward.1} parent=0
    _
  %s9 = ssub.s32 1, %s7
  %s10 = scalar_select 0, %s9, %s7
  $region1: #{py_model_forward.1} parent=0
    #allocation3 [shape = 'u8[4096]{0}', space=vmem, size = 0x1000, scoped, tag = 'output window, operand 0, single buffered']
    #allocation4 [shape = 's32[1]{0}', space=sflag, size = 0x4, scoped, tag = 'scoped memory for py_model_forward.1']
    %11 = vsyncpa [#allocation4], 0
    // Predicated region
    $region2: #{py_model_forward.1} parent=1 // pred_check
      _
    $region3: #{py_model_forward.1} parent=1 // pred_check_branch
      %13 = sbr.rel (0) target = $region5
    $region4: #{py_model_forward.1} parent=1 // pred_region
      _
    $region5: #{py_model_forward.1} parent=1 // pred_fallthru
      _
    // Predicated region
    $region6: #{py_model_forward.1} parent=1 // pred_check
      _
    $region7: #{py_model_forward.1} parent=1 // pred_check_branch
      %15 = sbr.rel (0) target = $region9
    $region8: #{py_model_forward.1} parent=1 // pred_region
      _
    $region9: #{py_model_forward.1} parent=1 // pred_fallthru
      _
    // Predicated region
    $region10: #{py_model_forward.1} parent=1 // pred_check
      _
    $region11: #{py_model_forward.1} parent=1 // pred_check_branch
      %17 = sbr.rel (0) target = $region13
    $region12: #{py_model_forward.1} parent=1 // pred_region
      _
    $region13: #{py_model_forward.1} parent=1 // pred_fallthru
      _
    // Predicated region
    $region14: #{py_model_forward.1} parent=1 // pred_check
      _
    $region15: #{py_model_forward.1} parent=1 // pred_check_branch
      %19 = sbr.rel (0) target = $region17
    $region16: #{py_model_forward.1} parent=1 // pred_region
      _
    $region17: #{py_model_forward.1} parent=1 // pred_fallthru
      _
    // Predicated region
    $region18: #{py_model_forward.1} parent=1 // pred_check
      _
    $region19: #{py_model_forward.1} parent=1 // pred_check_branch
      %21 = sbr.rel (0) target = $region21
    $region20: #{py_model_forward.1} parent=1 // pred_region
      _
    $region21: #{py_model_forward.1} parent=1 // pred_fallthru
      _
    // Predicated region
    $region22: #{py_model_forward.1} parent=1 // pred_check
      _
    $region23: #{py_model_forward.1} parent=1 // pred_check_branch
      %23 = sbr.rel (0) target = $region25
    $region24: #{py_model_forward.1} parent=1 // pred_region
      _
    $region25: #{py_model_forward.1} parent=1 // pred_fallthru
      _
    %v24 = vld [vmem:[%s0] sm:$0xff]
    %v25 = vld [vmem:[%s0 + $0x8] sm:$0xff]
    %v26 = vld [vmem:[%s0 + $0x10] sm:$0xff]
    %v27 = vld [vmem:[%s0 + $0x18] sm:$0xff]
    %v28 = vld [vmem:[%s0 + $0x20] sm:$0xff]
    %v29 = vld [vmem:[%s0 + $0x28] sm:$0xff]
    %v30 = vld [vmem:[%s0 + $0x30] sm:$0xff]
    %v31 = vld [vmem:[%s0 + $0x38] sm:$0xff]
    %v32 = vld [vmem:[%s1] sm:$0xff]
    %v33 = vld [vmem:[%s1 + $0x8] sm:$0xff]
    %v34 = vld [vmem:[%s3] sm:$0x1]
    %v36 = vlaneseq
    %v37 = vshrl.u32 %v36, 7
    %v38 = vsub.s32 0, %v37
    %v39 = vrot.slane %v34, %v38
    %vm41 = vcmask 130048
    %v43 = vsel %vm41, %v24, 0
    %v46 = vsel %vm41, %v25, 0
    %v49 = vsel %vm41, %v26, 0
    %v52 = vsel %vm41, %v27, 0
    %v55 = vsel %vm41, %v28, 0
    %v58 = vsel %vm41, %v29, 0
    %v61 = vsel %vm41, %v30, 0
    %v64 = vsel %vm41, %v31, 0
    %66 = vmatprep.subr.mxu0 0.0
    %67 = vmatpush1.msra.mxu0 %v32
    %68 = vmatprep.subr.mxu0 0.0
    %69 = vmatpush1.msra.mxu0 %v33
    %70 = vmatprep.subr.mxu0 0.0
    %71 = vmatpush1.msra.mxu0 0.0
    %72 = vmatprep.subr.mxu0 0.0
    %73 = vmatpush1.msra.mxu0 0.0
    %74 = vmatprep.subr.mxu0 0.0
    %75 = vmatpush1.msra.mxu0 0.0
    %76 = vmatprep.subr.mxu0 0.0
    %77 = vmatpush1.msra.mxu0 0.0
    %78 = vmatprep.subr.mxu0 0.0
    %79 = vmatpush1.msra.mxu0 0.0
    %80 = vmatprep.subr.mxu0 0.0
    %81 = vmatpush1.msra.mxu0 0.0
    %82 = vmatprep.subr.mxu0 0.0
    %83 = vmatpush1.msra.mxu0 0.0
    %84 = vmatprep.subr.mxu0 0.0
    %85 = vmatpush1.msra.mxu0 0.0
    %86 = vmatprep.subr.mxu0 0.0
    %87 = vmatpush1.msra.mxu0 0.0
    %88 = vmatprep.subr.mxu0 0.0
    %89 = vmatpush1.msra.mxu0 0.0
    %90 = vmatprep.subr.mxu0 0.0
    %91 = vmatpush1.msra.mxu0 0.0
    %92 = vmatprep.subr.mxu0 0.0
    %93 = vmatpush1.msra.mxu0 0.0
    %94 = vmatprep.subr.mxu0 0.0
    %95 = vmatpush1.msra.mxu0 0.0
    %96 = vmatprep.subr.mxu0 0.0
    %97 = vmatpush1.msra.mxu0 0.0
    %98 = vmatprep.subr.mxu0 0.0
    %99 = vmatpush1.msra.mxu0 0.0
    %100 = vmatprep.subr.mxu0 0.0
    %101 = vmatpush1.msra.mxu0 0.0
    %102 = vmatprep.subr.mxu0 0.0
    %103 = vmatpush1.msra.mxu0 0.0
    %104 = vmatprep.subr.mxu0 0.0
    %105 = vmatpush1.msra.mxu0 0.0
    %106 = vmatprep.subr.mxu0 0.0
    %107 = vmatpush1.msra.mxu0 0.0
    %108 = vmatprep.subr.mxu0 0.0
    %109 = vmatpush1.msra.mxu0 0.0
    %110 = vmatprep.subr.mxu0 0.0
    %111 = vmatpush1.msra.mxu0 0.0
    %112 = vmatprep.subr.mxu0 0.0
    %113 = vmatpush1.msra.mxu0 0.0
    %114 = vmatprep.subr.mxu0 0.0
    %115 = vmatpush1.msra.mxu0 0.0
    %116 = vmatprep.subr.mxu0 0.0
    %117 = vmatpush1.msra.mxu0 0.0
    %118 = vmatprep.subr.mxu0 0.0
    %119 = vmatpush1.msra.mxu0 0.0
    %120 = vmatprep.subr.mxu0 0.0
    %121 = vmatpush1.msra.mxu0 0.0
    %122 = vmatprep.subr.mxu0 0.0
    %123 = vmatpush1.msra.mxu0 0.0
    %124 = vmatprep.subr.mxu0 0.0
    %125 = vmatpush1.msra.mxu0 0.0
    %126 = vmatprep.subr.mxu0 0.0
    %127 = vmatpush1.msra.mxu0 0.0
    %128 = vmatprep.subr.mxu0 0.0
    %129 = vmatpush1.msra.mxu0 0.0
    %130 = vmatprep.mubr.f32.mxu0 0.0
    %131 = vmatmul.mubr.f32.gmra.mrb[0].mxu0 %v43
    %v132 = vpop.f32.mrb[0].mxu0
    %v133 = vadd.f32 %v39, %v132
    %v134 = vpop.f32.mrb[0].mxu0
    %135 = vmatprep.mubr.f32.mxu0 0.0
    %136 = vmatmul.mubr.f32.gmra.mrb[0].mxu0 %v46
    %v137 = vpop.f32.mrb[0].mxu0
    %v138 = vadd.f32 %v39, %v137
    %v139 = vpop.f32.mrb[0].mxu0
    %140 = vmatprep.mubr.f32.mxu0 0.0
    %141 = vmatmul.mubr.f32.gmra.mrb[0].mxu0 %v49
    %v142 = vpop.f32.mrb[0].mxu0
    %v143 = vadd.f32 %v39, %v142
    %v144 = vpop.f32.mrb[0].mxu0
    %145 = vmatprep.mubr.f32.mxu0 0.0
    %146 = vmatmul.mubr.f32.gmra.mrb[0].mxu0 %v52
    %v147 = vpop.f32.mrb[0].mxu0
    %v148 = vadd.f32 %v39, %v147
    %v149 = vpop.f32.mrb[0].mxu0
    %150 = vmatprep.mubr.f32.mxu0 0.0
    %151 = vmatmul.mubr.f32.gmra.mrb[0].mxu0 %v55
    %v152 = vpop.f32.mrb[0].mxu0
    %v153 = vadd.f32 %v39, %v152
    %v154 = vpop.f32.mrb[0].mxu0
    %155 = vmatprep.mubr.f32.mxu0 0.0
    %156 = vmatmul.mubr.f32.gmra.mrb[0].mxu0 %v58
    %v157 = vpop.f32.mrb[0].mxu0
    %v158 = vadd.f32 %v39, %v157
    %v159 = vpop.f32.mrb[0].mxu0
    %160 = vmatprep.mubr.f32.mxu0 0.0
    %161 = vmatmul.mubr.f32.gmra.mrb[0].mxu0 %v61
    %v162 = vpop.f32.mrb[0].mxu0
    %v163 = vadd.f32 %v39, %v162
    %v164 = vpop.f32.mrb[0].mxu0
    %165 = vmatprep.mubr.f32.mxu0 0.0
    %166 = vmatmul.mubr.f32.gmra.mrb[0].mxu0 %v64
    %v167 = vpop.f32.mrb[0].mxu0
    %v168 = vadd.f32 %v39, %v167
    %v169 = vpop.f32.mrb[0].mxu0
    %170 = vdwg.mxu0
    %171 = vst [vmem:[#allocation2] sm:$0xff] %v133
    %172 = vst [vmem:[#allocation2 + $0x8] sm:$0xff] %v138
    %173 = vst [vmem:[#allocation2 + $0x10] sm:$0xff] %v143
    %174 = vst [vmem:[#allocation2 + $0x18] sm:$0xff] %v148
    %175 = vst [vmem:[#allocation2 + $0x20] sm:$0xff] %v153
    %176 = vst [vmem:[#allocation2 + $0x28] sm:$0xff] %v158
    %177 = vst [vmem:[#allocation2 + $0x30] sm:$0xff] %v163
    %178 = vst [vmem:[#allocation2 + $0x38] sm:$0xff] %v168
    %v179 = vld [vmem:[#allocation2] sm:$0xff]
    %v180 = vld [vmem:[%s2] sm:$0xff]
    %v181 = vld [vmem:[%s2 + $0x8] sm:$0xff]
    %v182 = vld [vmem:[%s2 + $0x10] sm:$0xff]
    %v183 = vld [vmem:[%s2 + $0x18] sm:$0xff]
    %vm184 = vcmask 261120
    %v186 = vsel %vm184, 0.0, 0
    %188 = vmatprep.subr.mxu0 0.0
    %189 = vmatpush1.msra.mxu0 %v180
    %190 = vmatprep.subr.mxu0 0.0
    %191 = vmatpush1.msra.mxu0 %v181
    %192 = vmatprep.subr.mxu0 0.0
    %193 = vmatpush1.msra.mxu0 %v182
    %194 = vmatprep.subr.mxu0 0.0
    %195 = vmatpush1.msra.mxu0 %v183
    %196 = vmatprep.subr.mxu0 0.0
    %197 = vmatpush1.msra.mxu0 0.0
    %198 = vmatprep.subr.mxu0 0.0
    %199 = vmatpush1.msra.mxu0 0.0
    %200 = vmatprep.subr.mxu0 0.0
    %201 = vmatpush1.msra.mxu0 0.0
    %202 = vmatprep.subr.mxu0 0.0
    %203 = vmatpush1.msra.mxu0 0.0
    %204 = vmatprep.subr.mxu0 0.0
    %205 = vmatpush1.msra.mxu0 0.0
    %206 = vmatprep.subr.mxu0 0.0
    %207 = vmatpush1.msra.mxu0 0.0
    %208 = vmatprep.subr.mxu0 0.0
    %209 = vmatpush1.msra.mxu0 0.0
    %210 = vmatprep.subr.mxu0 0.0
    %211 = vmatpush1.msra.mxu0 0.0
    %212 = vmatprep.subr.mxu0 0.0
    %213 = vmatpush1.msra.mxu0 0.0
    %214 = vmatprep.subr.mxu0 0.0
    %215 = vmatpush1.msra.mxu0 0.0
    %216 = vmatprep.subr.mxu0 0.0
    %217 = vmatpush1.msra.mxu0 0.0
    %218 = vmatprep.subr.mxu0 0.0
    %219 = vmatpush1.msra.mxu0 0.0
    %220 = vmatprep.subr.mxu0 0.0
    %221 = vmatpush1.msra.mxu0 0.0
    %222 = vmatprep.subr.mxu0 0.0
    %223 = vmatpush1.msra.mxu0 0.0
    %224 = vmatprep.subr.mxu0 0.0
    %225 = vmatpush1.msra.mxu0 0.0
    %226 = vmatprep.subr.mxu0 0.0
    %227 = vmatpush1.msra.mxu0 0.0
    %228 = vmatprep.subr.mxu0 0.0
    %229 = vmatpush1.msra.mxu0 0.0
    %230 = vmatprep.subr.mxu0 0.0
    %231 = vmatpush1.msra.mxu0 0.0
    %232 = vmatprep.subr.mxu0 0.0
    %233 = vmatpush1.msra.mxu0 0.0
    %234 = vmatprep.subr.mxu0 0.0
    %235 = vmatpush1.msra.mxu0 0.0
    %236 = vmatprep.subr.mxu0 0.0
    %237 = vmatpush1.msra.mxu0 0.0
    %238 = vmatprep.subr.mxu0 0.0
    %239 = vmatpush1.msra.mxu0 0.0
    %240 = vmatprep.subr.mxu0 0.0
    %241 = vmatpush1.msra.mxu0 0.0
    %242 = vmatprep.subr.mxu0 0.0
    %243 = vmatpush1.msra.mxu0 0.0
    %244 = vmatprep.subr.mxu0 0.0
    %245 = vmatpush1.msra.mxu0 0.0
    %246 = vmatprep.subr.mxu0 0.0
    %247 = vmatpush1.msra.mxu0 0.0
    %248 = vmatprep.subr.mxu0 0.0
    %249 = vmatpush1.msra.mxu0 0.0
    %250 = vmatprep.subr.mxu0 0.0
    %251 = vmatpush1.msra.mxu0 0.0
    %252 = vmatprep.mubr.f32.mxu0 0.0
    %253 = vmatmul.mubr.f32.gmra.mrb[0].mxu0 %v186
    %v254 = vpop.f32.mrb[0].mxu0
    %v255 = vadd.f32 0.0, %v254
    %v256 = vpop.f32.mrb[0].mxu0
    %257 = vdwg.mxu0
    %v258 = vadd.f32 %v179, %v255
    %v259 = vxor.u32 %v258, 2147483648
    %v260 = vmul.f32 %v259, 1.442695
    %v261 = vpow.pop %v260
    %v262 = vadd.f32 %v261, 1.0
    %v263 = vrcp.pop %v262
    %v264 = vmul.f32 1.0, %v263
    %v265 = vtanh.pop %v258
    %v266 = vmul.f32 %v264, 0.0
    %268 = vrot.lane.b32.xlu0 %v265, 32
    %v269 = vpop.permute.xlu0 %268
    %v271 = vmul.f32 %v264, %v269
    %273 = vrot.lane.b32.xlu0 %v271, 32
    %v274 = vpop.permute.xlu0 %273
    %v276 = vadd.f32 %v266, %v274
    %v277 = vtanh.pop %v276
    %279 = vrot.lane.b32.xlu0 %v277, 32
    %v280 = vpop.permute.xlu0 %279
    %v282 = vmul.f32 %v264, %v280
    %s283 = scalar_lea.vmem [#allocation2], 8
    %v284 = vld [vmem:[%s283] sm:$0xff]
    %286 = vrot.lane.b32.xlu0 %v282, 64
    %v287 = vpop.permute.xlu0 %286
    %v288 = vsel %vm184, %v287, 0
    %290 = vmatprep.subr.mxu0 0.0
    %291 = vmatpush1.msra.mxu0 %v180
    %292 = vmatprep.subr.mxu0 0.0
    %293 = vmatpush1.msra.mxu0 %v181
    %294 = vmatprep.subr.mxu0 0.0
    %295 = vmatpush1.msra.mxu0 %v182
    %296 = vmatprep.subr.mxu0 0.0
    %297 = vmatpush1.msra.mxu0 %v183
    %298 = vmatprep.subr.mxu0 0.0
    %299 = vmatpush1.msra.mxu0 0.0
    %300 = vmatprep.subr.mxu0 0.0
    %301 = vmatpush1.msra.mxu0 0.0
    %302 = vmatprep.subr.mxu0 0.0
    %303 = vmatpush1.msra.mxu0 0.0
    %304 = vmatprep.subr.mxu0 0.0
    %305 = vmatpush1.msra.mxu0 0.0
    %306 = vmatprep.subr.mxu0 0.0
    %307 = vmatpush1.msra.mxu0 0.0
    %308 = vmatprep.subr.mxu0 0.0
    %309 = vmatpush1.msra.mxu0 0.0
    %310 = vmatprep.subr.mxu0 0.0
    %311 = vmatpush1.msra.mxu0 0.0
    %312 = vmatprep.subr.mxu0 0.0
    %313 = vmatpush1.msra.mxu0 0.0
    %314 = vmatprep.subr.mxu0 0.0
    %315 = vmatpush1.msra.mxu0 0.0
    %316 = vmatprep.subr.mxu0 0.0
    %317 = vmatpush1.msra.mxu0 0.0
    %318 = vmatprep.subr.mxu0 0.0
    %319 = vmatpush1.msra.mxu0 0.0
    %320 = vmatprep.subr.mxu0 0.0
    %321 = vmatpush1.msra.mxu0 0.0
    %322 = vmatprep.subr.mxu0 0.0
    %323 = vmatpush1.msra.mxu0 0.0
    %324 = vmatprep.subr.mxu0 0.0
    %325 = vmatpush1.msra.mxu0 0.0
    %326 = vmatprep.subr.mxu0 0.0
    %327 = vmatpush1.msra.mxu0 0.0
    %328 = vmatprep.subr.mxu0 0.0
    %329 = vmatpush1.msra.mxu0 0.0
    %330 = vmatprep.subr.mxu0 0.0
    %331 = vmatpush1.msra.mxu0 0.0
    %332 = vmatprep.subr.mxu0 0.0
    %333 = vmatpush1.msra.mxu0 0.0
    %334 = vmatprep.subr.mxu0 0.0
    %335 = vmatpush1.msra.mxu0 0.0
    %336 = vmatprep.subr.mxu0 0.0
    %337 = vmatpush1.msra.mxu0 0.0
    %338 = vmatprep.subr.mxu0 0.0
    %339 = vmatpush1.msra.mxu0 0.0
    %340 = vmatprep.subr.mxu0 0.0
    %341 = vmatpush1.msra.mxu0 0.0
    %342 = vmatprep.subr.mxu0 0.0
    %343 = vmatpush1.msra.mxu0 0.0
    %344 = vmatprep.subr.mxu0 0.0
    %345 = vmatpush1.msra.mxu0 0.0
    %346 = vmatprep.subr.mxu0 0.0
    %347 = vmatpush1.msra.mxu0 0.0
    %348 = vmatprep.subr.mxu0 0.0
    %349 = vmatpush1.msra.mxu0 0.0
    %350 = vmatprep.subr.mxu0 0.0
    %351 = vmatpush1.msra.mxu0 0.0
    %352 = vmatprep.subr.mxu0 0.0
    %353 = vmatpush1.msra.mxu0 0.0
    %354 = vmatprep.mubr.f32.mxu0 0.0
    %355 = vmatmul.mubr.f32.gmra.mrb[0].mxu0 %v288
    %v356 = vpop.f32.mrb[0].mxu0
    %v357 = vadd.f32 0.0, %v356
    %v358 = vpop.f32.mrb[0].mxu0
    %359 = vdwg.mxu0
    %v360 = vadd.f32 %v284, %v357
    %v361 = vxor.u32 %v360, 2147483648
    %v362 = vmul.f32 %v361, 1.442695
    %v363 = vpow.pop %v362
    %v364 = vadd.f32 %v363, 1.0
    %v365 = vrcp.pop %v364
    %v366 = vmul.f32 1.0, %v365
    %v367 = vtanh.pop %v360
    %v368 = vmul.f32 %v366, %v276
    %370 = vrot.lane.b32.xlu0 %v367, 32
    %v371 = vpop.permute.xlu0 %370
    %v373 = vmul.f32 %v366, %v371
    %375 = vrot.lane.b32.xlu0 %v373, 32
    %v376 = vpop.permute.xlu0 %375
    %v378 = vadd.f32 %v368, %v376
    %v379 = vtanh.pop %v378
    %381 = vrot.lane.b32.xlu0 %v379, 32
    %v382 = vpop.permute.xlu0 %381
    %v384 = vmul.f32 %v366, %v382
    %s385 = scalar_lea.vmem [#allocation2], 16
    %v386 = vld [vmem:[%s385] sm:$0xff]
    %388 = vrot.lane.b32.xlu0 %v384, 64
    %v389 = vpop.permute.xlu0 %388
    %v390 = vsel %vm184, %v389, 0
    %392 = vmatprep.subr.mxu0 0.0
    %393 = vmatpush1.msra.mxu0 %v180
    %394 = vmatprep.subr.mxu0 0.0
    %395 = vmatpush1.msra.mxu0 %v181
    %396 = vmatprep.subr.mxu0 0.0
    %397 = vmatpush1.msra.mxu0 %v182
    %398 = vmatprep.subr.mxu0 0.0
    %399 = vmatpush1.msra.mxu0 %v183
    %400 = vmatprep.subr.mxu0 0.0
    %401 = vmatpush1.msra.mxu0 0.0
    %402 = vmatprep.subr.mxu0 0.0
    %403 = vmatpush1.msra.mxu0 0.0
    %404 = vmatprep.subr.mxu0 0.0
    %405 = vmatpush1.msra.mxu0 0.0
    %406 = vmatprep.subr.mxu0 0.0
    %407 = vmatpush1.msra.mxu0 0.0
    %408 = vmatprep.subr.mxu0 0.0
    %409 = vmatpush1.msra.mxu0 0.0
    %410 = vmatprep.subr.mxu0 0.0
    %411 = vmatpush1.msra.mxu0 0.0
    %412 = vmatprep.subr.mxu0 0.0
    %413 = vmatpush1.msra.mxu0 0.0
    %414 = vmatprep.subr.mxu0 0.0
    %415 = vmatpush1.msra.mxu0 0.0
    %416 = vmatprep.subr.mxu0 0.0
    %417 = vmatpush1.msra.mxu0 0.0
    %418 = vmatprep.subr.mxu0 0.0
    %419 = vmatpush1.msra.mxu0 0.0
    %420 = vmatprep.subr.mxu0 0.0
    %421 = vmatpush1.msra.mxu0 0.0
    %422 = vmatprep.subr.mxu0 0.0
    %423 = vmatpush1.msra.mxu0 0.0
    %424 = vmatprep.subr.mxu0 0.0
    %425 = vmatpush1.msra.mxu0 0.0
    %426 = vmatprep.subr.mxu0 0.0
    %427 = vmatpush1.msra.mxu0 0.0
    %428 = vmatprep.subr.mxu0 0.0
    %429 = vmatpush1.msra.mxu0 0.0
    %430 = vmatprep.subr.mxu0 0.0
    %431 = vmatpush1.msra.mxu0 0.0
    %432 = vmatprep.subr.mxu0 0.0
    %433 = vmatpush1.msra.mxu0 0.0
    %434 = vmatprep.subr.mxu0 0.0
    %435 = vmatpush1.msra.mxu0 0.0
    %436 = vmatprep.subr.mxu0 0.0
    %437 = vmatpush1.msra.mxu0 0.0
    %438 = vmatprep.subr.mxu0 0.0
    %439 = vmatpush1.msra.mxu0 0.0
    %440 = vmatprep.subr.mxu0 0.0
    %441 = vmatpush1.msra.mxu0 0.0
    %442 = vmatprep.subr.mxu0 0.0
    %443 = vmatpush1.msra.mxu0 0.0
    %444 = vmatprep.subr.mxu0 0.0
    %445 = vmatpush1.msra.mxu0 0.0
    %446 = vmatprep.subr.mxu0 0.0
    %447 = vmatpush1.msra.mxu0 0.0
    %448 = vmatprep.subr.mxu0 0.0
    %449 = vmatpush1.msra.mxu0 0.0
    %450 = vmatprep.subr.mxu0 0.0
    %451 = vmatpush1.msra.mxu0 0.0
    %452 = vmatprep.subr.mxu0 0.0
    %453 = vmatpush1.msra.mxu0 0.0
    %454 = vmatprep.subr.mxu0 0.0
    %455 = vmatpush1.msra.mxu0 0.0
    %456 = vmatprep.mubr.f32.mxu0 0.0
    %457 = vmatmul.mubr.f32.gmra.mrb[0].mxu0 %v390
    %v458 = vpop.f32.mrb[0].mxu0
    %v459 = vadd.f32 0.0, %v458
    %v460 = vpop.f32.mrb[0].mxu0
    %461 = vdwg.mxu0
    %v462 = vadd.f32 %v386, %v459
    %v463 = vxor.u32 %v462, 2147483648
    %v464 = vmul.f32 %v463, 1.442695
    %v465 = vpow.pop %v464
    %v466 = vadd.f32 %v465, 1.0
    %v467 = vrcp.pop %v466
    %v468 = vmul.f32 1.0, %v467
    %v469 = vtanh.pop %v462
    %v470 = vmul.f32 %v468, %v378
    %472 = vrot.lane.b32.xlu0 %v469, 32
    %v473 = vpop.permute.xlu0 %472
    %v475 = vmul.f32 %v468, %v473
    %477 = vrot.lane.b32.xlu0 %v475, 32
    %v478 = vpop.permute.xlu0 %477
    %v480 = vadd.f32 %v470, %v478
    %v481 = vtanh.pop %v480
    %483 = vrot.lane.b32.xlu0 %v481, 32
    %v484 = vpop.permute.xlu0 %483
    %v486 = vmul.f32 %v468, %v484
    %s487 = scalar_lea.vmem [#allocation2], 24
    %v488 = vld [vmem:[%s487] sm:$0xff]
    %490 = vrot.lane.b32.xlu0 %v486, 64
    %v491 = vpop.permute.xlu0 %490
    %v492 = vsel %vm184, %v491, 0
    %494 = vmatprep.subr.mxu0 0.0
    %495 = vmatpush1.msra.mxu0 %v180
    %496 = vmatprep.subr.mxu0 0.0
    %497 = vmatpush1.msra.mxu0 %v181
    %498 = vmatprep.subr.mxu0 0.0
    %499 = vmatpush1.msra.mxu0 %v182
    %500 = vmatprep.subr.mxu0 0.0
    %501 = vmatpush1.msra.mxu0 %v183
    %502 = vmatprep.subr.mxu0 0.0
    %503 = vmatpush1.msra.mxu0 0.0
    %504 = vmatprep.subr.mxu0 0.0
    %505 = vmatpush1.msra.mxu0 0.0
    %506 = vmatprep.subr.mxu0 0.0
    %507 = vmatpush1.msra.mxu0 0.0
    %508 = vmatprep.subr.mxu0 0.0
    %509 = vmatpush1.msra.mxu0 0.0
    %510 = vmatprep.subr.mxu0 0.0
    %511 = vmatpush1.msra.mxu0 0.0
    %512 = vmatprep.subr.mxu0 0.0
    %513 = vmatpush1.msra.mxu0 0.0
    %514 = vmatprep.subr.mxu0 0.0
    %515 = vmatpush1.msra.mxu0 0.0
    %516 = vmatprep.subr.mxu0 0.0
    %517 = vmatpush1.msra.mxu0 0.0
    %518 = vmatprep.subr.mxu0 0.0
    %519 = vmatpush1.msra.mxu0 0.0
    %520 = vmatprep.subr.mxu0 0.0
    %521 = vmatpush1.msra.mxu0 0.0
    %522 = vmatprep.subr.mxu0 0.0
    %523 = vmatpush1.msra.mxu0 0.0
    %524 = vmatprep.subr.mxu0 0.0
    %525 = vmatpush1.msra.mxu0 0.0
    %526 = vmatprep.subr.mxu0 0.0
    %527 = vmatpush1.msra.mxu0 0.0
    %528 = vmatprep.subr.mxu0 0.0
    %529 = vmatpush1.msra.mxu0 0.0
    %530 = vmatprep.subr.mxu0 0.0
    %531 = vmatpush1.msra.mxu0 0.0
    %532 = vmatprep.subr.mxu0 0.0
    %533 = vmatpush1.msra.mxu0 0.0
    %534 = vmatprep.subr.mxu0 0.0
    %535 = vmatpush1.msra.mxu0 0.0
    %536 = vmatprep.subr.mxu0 0.0
    %537 = vmatpush1.msra.mxu0 0.0
    %538 = vmatprep.subr.mxu0 0.0
    %539 = vmatpush1.msra.mxu0 0.0
    %540 = vmatprep.subr.mxu0 0.0
    %541 = vmatpush1.msra.mxu0 0.0
    %542 = vmatprep.subr.mxu0 0.0
    %543 = vmatpush1.msra.mxu0 0.0
    %544 = vmatprep.subr.mxu0 0.0
    %545 = vmatpush1.msra.mxu0 0.0
    %546 = vmatprep.subr.mxu0 0.0
    %547 = vmatpush1.msra.mxu0 0.0
    %548 = vmatprep.subr.mxu0 0.0
    %549 = vmatpush1.msra.mxu0 0.0
    %550 = vmatprep.subr.mxu0 0.0
    %551 = vmatpush1.msra.mxu0 0.0
    %552 = vmatprep.subr.mxu0 0.0
    %553 = vmatpush1.msra.mxu0 0.0
    %554 = vmatprep.subr.mxu0 0.0
    %555 = vmatpush1.msra.mxu0 0.0
    %556 = vmatprep.subr.mxu0 0.0
    %557 = vmatpush1.msra.mxu0 0.0
    %558 = vmatprep.mubr.f32.mxu0 0.0
    %559 = vmatmul.mubr.f32.gmra.mrb[0].mxu0 %v492
    %v560 = vpop.f32.mrb[0].mxu0
    %v561 = vadd.f32 0.0, %v560
    %v562 = vpop.f32.mrb[0].mxu0
    %563 = vdwg.mxu0
    %v564 = vadd.f32 %v488, %v561
    %v565 = vxor.u32 %v564, 2147483648
    %v566 = vmul.f32 %v565, 1.442695
    %v567 = vpow.pop %v566
    %v568 = vadd.f32 %v567, 1.0
    %v569 = vrcp.pop %v568
    %v570 = vmul.f32 1.0, %v569
    %v571 = vtanh.pop %v564
    %v572 = vmul.f32 %v570, %v480
    %574 = vrot.lane.b32.xlu0 %v571, 32
    %v575 = vpop.permute.xlu0 %574
    %v577 = vmul.f32 %v570, %v575
    %579 = vrot.lane.b32.xlu0 %v577, 32
    %v580 = vpop.permute.xlu0 %579
    %v582 = vadd.f32 %v572, %v580
    %v583 = vtanh.pop %v582
    %585 = vrot.lane.b32.xlu0 %v583, 32
    %v586 = vpop.permute.xlu0 %585
    %v588 = vmul.f32 %v570, %v586
    %s589 = scalar_lea.vmem [#allocation2], 32
    %v590 = vld [vmem:[%s589] sm:$0xff]
    %592 = vrot.lane.b32.xlu0 %v588, 64
    %v593 = vpop.permute.xlu0 %592
    %v594 = vsel %vm184, %v593, 0
    %596 = vmatprep.subr.mxu0 0.0
    %597 = vmatpush1.msra.mxu0 %v180
    %598 = vmatprep.subr.mxu0 0.0
    %599 = vmatpush1.msra.mxu0 %v181
    %600 = vmatprep.subr.mxu0 0.0
    %601 = vmatpush1.msra.mxu0 %v182
    %602 = vmatprep.subr.mxu0 0.0
    %603 = vmatpush1.msra.mxu0 %v183
    %604 = vmatprep.subr.mxu0 0.0
    %605 = vmatpush1.msra.mxu0 0.0
    %606 = vmatprep.subr.mxu0 0.0
    %607 = vmatpush1.msra.mxu0 0.0
    %608 = vmatprep.subr.mxu0 0.0
    %609 = vmatpush1.msra.mxu0 0.0
    %610 = vmatprep.subr.mxu0 0.0
    %611 = vmatpush1.msra.mxu0 0.0
    %612 = vmatprep.subr.mxu0 0.0
    %613 = vmatpush1.msra.mxu0 0.0
    %614 = vmatprep.subr.mxu0 0.0
    %615 = vmatpush1.msra.mxu0 0.0
    %616 = vmatprep.subr.mxu0 0.0
    %617 = vmatpush1.msra.mxu0 0.0
    %618 = vmatprep.subr.mxu0 0.0
    %619 = vmatpush1.msra.mxu0 0.0
    %620 = vmatprep.subr.mxu0 0.0
    %621 = vmatpush1.msra.mxu0 0.0
    %622 = vmatprep.subr.mxu0 0.0
    %623 = vmatpush1.msra.mxu0 0.0
    %624 = vmatprep.subr.mxu0 0.0
    %625 = vmatpush1.msra.mxu0 0.0
    %626 = vmatprep.subr.mxu0 0.0
    %627 = vmatpush1.msra.mxu0 0.0
    %628 = vmatprep.subr.mxu0 0.0
    %629 = vmatpush1.msra.mxu0 0.0
    %630 = vmatprep.subr.mxu0 0.0
    %631 = vmatpush1.msra.mxu0 0.0
    %632 = vmatprep.subr.mxu0 0.0
    %633 = vmatpush1.msra.mxu0 0.0
    %634 = vmatprep.subr.mxu0 0.0
    %635 = vmatpush1.msra.mxu0 0.0
    %636 = vmatprep.subr.mxu0 0.0
    %637 = vmatpush1.msra.mxu0 0.0
    %638 = vmatprep.subr.mxu0 0.0
    %639 = vmatpush1.msra.mxu0 0.0
    %640 = vmatprep.subr.mxu0 0.0
    %641 = vmatpush1.msra.mxu0 0.0
    %642 = vmatprep.subr.mxu0 0.0
    %643 = vmatpush1.msra.mxu0 0.0
    %644 = vmatprep.subr.mxu0 0.0
    %645 = vmatpush1.msra.mxu0 0.0
    %646 = vmatprep.subr.mxu0 0.0
    %647 = vmatpush1.msra.mxu0 0.0
    %648 = vmatprep.subr.mxu0 0.0
    %649 = vmatpush1.msra.mxu0 0.0
    %650 = vmatprep.subr.mxu0 0.0
    %651 = vmatpush1.msra.mxu0 0.0
    %652 = vmatprep.subr.mxu0 0.0
    %653 = vmatpush1.msra.mxu0 0.0
    %654 = vmatprep.subr.mxu0 0.0
    %655 = vmatpush1.msra.mxu0 0.0
    %656 = vmatprep.subr.mxu0 0.0
    %657 = vmatpush1.msra.mxu0 0.0
    %658 = vmatprep.subr.mxu0 0.0
    %659 = vmatpush1.msra.mxu0 0.0
    %660 = vmatprep.mubr.f32.mxu0 0.0
    %661 = vmatmul.mubr.f32.gmra.mrb[0].mxu0 %v594
    %v662 = vpop.f32.mrb[0].mxu0
    %v663 = vadd.f32 0.0, %v662
    %v664 = vpop.f32.mrb[0].mxu0
    %665 = vdwg.mxu0
    %v666 = vadd.f32 %v590, %v663
    %v667 = vxor.u32 %v666, 2147483648
    %v668 = vmul.f32 %v667, 1.442695
    %v669 = vpow.pop %v668
    %v670 = vadd.f32 %v669, 1.0
    %v671 = vrcp.pop %v670
    %v672 = vmul.f32 1.0, %v671
    %v673 = vtanh.pop %v666
    %v674 = vmul.f32 %v672, %v582
    %676 = vrot.lane.b32.xlu0 %v673, 32
    %v677 = vpop.permute.xlu0 %676
    %v679 = vmul.f32 %v672, %v677
    %681 = vrot.lane.b32.xlu0 %v679, 32
    %v682 = vpop.permute.xlu0 %681
    %v684 = vadd.f32 %v674, %v682
    %v685 = vtanh.pop %v684
    %687 = vrot.lane.b32.xlu0 %v685, 32
    %v688 = vpop.permute.xlu0 %687
    %v690 = vmul.f32 %v672, %v688
    %s691 = scalar_lea.vmem [#allocation2], 40
    %v692 = vld [vmem:[%s691] sm:$0xff]
    %694 = vrot.lane.b32.xlu0 %v690, 64
    %v695 = vpop.permute.xlu0 %694
    %v696 = vsel %vm184, %v695, 0
    %698 = vmatprep.subr.mxu0 0.0
    %699 = vmatpush1.msra.mxu0 %v180
    %700 = vmatprep.subr.mxu0 0.0
    %701 = vmatpush1.msra.mxu0 %v181
    %702 = vmatprep.subr.mxu0 0.0
    %703 = vmatpush1.msra.mxu0 %v182
    %704 = vmatprep.subr.mxu0 0.0
    %705 = vmatpush1.msra.mxu0 %v183
    %706 = vmatprep.subr.mxu0 0.0
    %707 = vmatpush1.msra.mxu0 0.0
    %708 = vmatprep.subr.mxu0 0.0
    %709 = vmatpush1.msra.mxu0 0.0
    %710 = vmatprep.subr.mxu0 0.0
    %711 = vmatpush1.msra.mxu0 0.0
    %712 = vmatprep.subr.mxu0 0.0
    %713 = vmatpush1.msra.mxu0 0.0
    %714 = vmatprep.subr.mxu0 0.0
    %715 = vmatpush1.msra.mxu0 0.0
    %716 = vmatprep.subr.mxu0 0.0
    %717 = vmatpush1.msra.mxu0 0.0
    %718 = vmatprep.subr.mxu0 0.0
    %719 = vmatpush1.msra.mxu0 0.0
    %720 = vmatprep.subr.mxu0 0.0
    %721 = vmatpush1.msra.mxu0 0.0
    %722 = vmatprep.subr.mxu0 0.0
    %723 = vmatpush1.msra.mxu0 0.0
    %724 = vmatprep.subr.mxu0 0.0
    %725 = vmatpush1.msra.mxu0 0.0
    %726 = vmatprep.subr.mxu0 0.0
    %727 = vmatpush1.msra.mxu0 0.0
    %728 = vmatprep.subr.mxu0 0.0
    %729 = vmatpush1.msra.mxu0 0.0
    %730 = vmatprep.subr.mxu0 0.0
    %731 = vmatpush1.msra.mxu0 0.0
    %732 = vmatprep.subr.mxu0 0.0
    %733 = vmatpush1.msra.mxu0 0.0
    %734 = vmatprep.subr.mxu0 0.0
    %735 = vmatpush1.msra.mxu0 0.0
    %736 = vmatprep.subr.mxu0 0.0
    %737 = vmatpush1.msra.mxu0 0.0
    %738 = vmatprep.subr.mxu0 0.0
    %739 = vmatpush1.msra.mxu0 0.0
    %740 = vmatprep.subr.mxu0 0.0
    %741 = vmatpush1.msra.mxu0 0.0
    %742 = vmatprep.subr.mxu0 0.0
    %743 = vmatpush1.msra.mxu0 0.0
    %744 = vmatprep.subr.mxu0 0.0
    %745 = vmatpush1.msra.mxu0 0.0
    %746 = vmatprep.subr.mxu0 0.0
    %747 = vmatpush1.msra.mxu0 0.0
    %748 = vmatprep.subr.mxu0 0.0
    %749 = vmatpush1.msra.mxu0 0.0
    %750 = vmatprep.subr.mxu0 0.0
    %751 = vmatpush1.msra.mxu0 0.0
    %752 = vmatprep.subr.mxu0 0.0
    %753 = vmatpush1.msra.mxu0 0.0
    %754 = vmatprep.subr.mxu0 0.0
    %755 = vmatpush1.msra.mxu0 0.0
    %756 = vmatprep.subr.mxu0 0.0
    %757 = vmatpush1.msra.mxu0 0.0
    %758 = vmatprep.subr.mxu0 0.0
    %759 = vmatpush1.msra.mxu0 0.0
    %760 = vmatprep.subr.mxu0 0.0
    %761 = vmatpush1.msra.mxu0 0.0
    %762 = vmatprep.mubr.f32.mxu0 0.0
    %763 = vmatmul.mubr.f32.gmra.mrb[0].mxu0 %v696
    %v764 = vpop.f32.mrb[0].mxu0
    %v765 = vadd.f32 0.0, %v764
    %v766 = vpop.f32.mrb[0].mxu0
    %767 = vdwg.mxu0
    %v768 = vadd.f32 %v692, %v765
    %v769 = vxor.u32 %v768, 2147483648
    %v770 = vmul.f32 %v769, 1.442695
    %v771 = vpow.pop %v770
    %v772 = vadd.f32 %v771, 1.0
    %v773 = vrcp.pop %v772
    %v774 = vmul.f32 1.0, %v773
    %v775 = vtanh.pop %v768
    %v776 = vmul.f32 %v774, %v684
    %778 = vrot.lane.b32.xlu0 %v775, 32
    %v779 = vpop.permute.xlu0 %778
    %v781 = vmul.f32 %v774, %v779
    %783 = vrot.lane.b32.xlu0 %v781, 32
    %v784 = vpop.permute.xlu0 %783
    %v786 = vadd.f32 %v776, %v784
    %v787 = vtanh.pop %v786
    %789 = vrot.lane.b32.xlu0 %v787, 32
    %v790 = vpop.permute.xlu0 %789
    %v792 = vmul.f32 %v774, %v790
    %s793 = scalar_lea.vmem [#allocation2], 48
    %v794 = vld [vmem:[%s793] sm:$0xff]
    %796 = vrot.lane.b32.xlu0 %v792, 64
    %v797 = vpop.permute.xlu0 %796
    %v798 = vsel %vm184, %v797, 0
    %800 = vmatprep.subr.mxu0 0.0
    %801 = vmatpush1.msra.mxu0 %v180
    %802 = vmatprep.subr.mxu0 0.0
    %803 = vmatpush1.msra.mxu0 %v181
    %804 = vmatprep.subr.mxu0 0.0
    %805 = vmatpush1.msra.mxu0 %v182
    %806 = vmatprep.subr.mxu0 0.0
    %807 = vmatpush1.msra.mxu0 %v183
    %808 = vmatprep.subr.mxu0 0.0
    %809 = vmatpush1.msra.mxu0 0.0
    %810 = vmatprep.subr.mxu0 0.0
    %811 = vmatpush1.msra.mxu0 0.0
    %812 = vmatprep.subr.mxu0 0.0
    %813 = vmatpush1.msra.mxu0 0.0
    %814 = vmatprep.subr.mxu0 0.0
    %815 = vmatpush1.msra.mxu0 0.0
    %816 = vmatprep.subr.mxu0 0.0
    %817 = vmatpush1.msra.mxu0 0.0
    %818 = vmatprep.subr.mxu0 0.0
    %819 = vmatpush1.msra.mxu0 0.0
    %820 = vmatprep.subr.mxu0 0.0
    %821 = vmatpush1.msra.mxu0 0.0
    %822 = vmatprep.subr.mxu0 0.0
    %823 = vmatpush1.msra.mxu0 0.0
    %824 = vmatprep.subr.mxu0 0.0
    %825 = vmatpush1.msra.mxu0 0.0
    %826 = vmatprep.subr.mxu0 0.0
    %827 = vmatpush1.msra.mxu0 0.0
    %828 = vmatprep.subr.mxu0 0.0
    %829 = vmatpush1.msra.mxu0 0.0
    %830 = vmatprep.subr.mxu0 0.0
    %831 = vmatpush1.msra.mxu0 0.0
    %832 = vmatprep.subr.mxu0 0.0
    %833 = vmatpush1.msra.mxu0 0.0
    %834 = vmatprep.subr.mxu0 0.0
    %835 = vmatpush1.msra.mxu0 0.0
    %836 = vmatprep.subr.mxu0 0.0
    %837 = vmatpush1.msra.mxu0 0.0
    %838 = vmatprep.subr.mxu0 0.0
    %839 = vmatpush1.msra.mxu0 0.0
    %840 = vmatprep.subr.mxu0 0.0
    %841 = vmatpush1.msra.mxu0 0.0
    %842 = vmatprep.subr.mxu0 0.0
    %843 = vmatpush1.msra.mxu0 0.0
    %844 = vmatprep.subr.mxu0 0.0
    %845 = vmatpush1.msra.mxu0 0.0
    %846 = vmatprep.subr.mxu0 0.0
    %847 = vmatpush1.msra.mxu0 0.0
    %848 = vmatprep.subr.mxu0 0.0
    %849 = vmatpush1.msra.mxu0 0.0
    %850 = vmatprep.subr.mxu0 0.0
    %851 = vmatpush1.msra.mxu0 0.0
    %852 = vmatprep.subr.mxu0 0.0
    %853 = vmatpush1.msra.mxu0 0.0
    %854 = vmatprep.subr.mxu0 0.0
    %855 = vmatpush1.msra.mxu0 0.0
    %856 = vmatprep.subr.mxu0 0.0
    %857 = vmatpush1.msra.mxu0 0.0
    %858 = vmatprep.subr.mxu0 0.0
    %859 = vmatpush1.msra.mxu0 0.0
    %860 = vmatprep.subr.mxu0 0.0
    %861 = vmatpush1.msra.mxu0 0.0
    %862 = vmatprep.subr.mxu0 0.0
    %863 = vmatpush1.msra.mxu0 0.0
    %864 = vmatprep.mubr.f32.mxu0 0.0
    %865 = vmatmul.mubr.f32.gmra.mrb[0].mxu0 %v798
    %v866 = vpop.f32.mrb[0].mxu0
    %v867 = vadd.f32 0.0, %v866
    %v868 = vpop.f32.mrb[0].mxu0
    %869 = vdwg.mxu0
    %v870 = vadd.f32 %v794, %v867
    %v871 = vxor.u32 %v870, 2147483648
    %v872 = vmul.f32 %v871, 1.442695
    %v873 = vpow.pop %v872
    %v874 = vadd.f32 %v873, 1.0
    %v875 = vrcp.pop %v874
    %v876 = vmul.f32 1.0, %v875
    %v877 = vtanh.pop %v870
    %v878 = vmul.f32 %v876, %v786
    %880 = vrot.lane.b32.xlu0 %v877, 32
    %v881 = vpop.permute.xlu0 %880
    %v883 = vmul.f32 %v876, %v881
    %885 = vrot.lane.b32.xlu0 %v883, 32
    %v886 = vpop.permute.xlu0 %885
    %v888 = vadd.f32 %v878, %v886
    %v889 = vtanh.pop %v888
    %891 = vrot.lane.b32.xlu0 %v889, 32
    %v892 = vpop.permute.xlu0 %891
    %v894 = vmul.f32 %v876, %v892
    %s895 = scalar_lea.vmem [#allocation2], 56
    %v896 = vld [vmem:[%s895] sm:$0xff]
    %898 = vrot.lane.b32.xlu0 %v894, 64
    %v899 = vpop.permute.xlu0 %898
    %v900 = vsel %vm184, %v899, 0
    %902 = vmatprep.subr.mxu0 0.0
    %903 = vmatpush1.msra.mxu0 %v180
    %904 = vmatprep.subr.mxu0 0.0
    %905 = vmatpush1.msra.mxu0 %v181
    %906 = vmatprep.subr.mxu0 0.0
    %907 = vmatpush1.msra.mxu0 %v182
    %908 = vmatprep.subr.mxu0 0.0
    %909 = vmatpush1.msra.mxu0 %v183
    %910 = vmatprep.subr.mxu0 0.0
    %911 = vmatpush1.msra.mxu0 0.0
    %912 = vmatprep.subr.mxu0 0.0
    %913 = vmatpush1.msra.mxu0 0.0
    %914 = vmatprep.subr.mxu0 0.0
    %915 = vmatpush1.msra.mxu0 0.0
    %916 = vmatprep.subr.mxu0 0.0
    %917 = vmatpush1.msra.mxu0 0.0
    %918 = vmatprep.subr.mxu0 0.0
    %919 = vmatpush1.msra.mxu0 0.0
    %920 = vmatprep.subr.mxu0 0.0
    %921 = vmatpush1.msra.mxu0 0.0
    %922 = vmatprep.subr.mxu0 0.0
    %923 = vmatpush1.msra.mxu0 0.0
    %924 = vmatprep.subr.mxu0 0.0
    %925 = vmatpush1.msra.mxu0 0.0
    %926 = vmatprep.subr.mxu0 0.0
    %927 = vmatpush1.msra.mxu0 0.0
    %928 = vmatprep.subr.mxu0 0.0
    %929 = vmatpush1.msra.mxu0 0.0
    %930 = vmatprep.subr.mxu0 0.0
    %931 = vmatpush1.msra.mxu0 0.0
    %932 = vmatprep.subr.mxu0 0.0
    %933 = vmatpush1.msra.mxu0 0.0
    %934 = vmatprep.subr.mxu0 0.0
    %935 = vmatpush1.msra.mxu0 0.0
    %936 = vmatprep.subr.mxu0 0.0
    %937 = vmatpush1.msra.mxu0 0.0
    %938 = vmatprep.subr.mxu0 0.0
    %939 = vmatpush1.msra.mxu0 0.0
    %940 = vmatprep.subr.mxu0 0.0
    %941 = vmatpush1.msra.mxu0 0.0
    %942 = vmatprep.subr.mxu0 0.0
    %943 = vmatpush1.msra.mxu0 0.0
    %944 = vmatprep.subr.mxu0 0.0
    %945 = vmatpush1.msra.mxu0 0.0
    %946 = vmatprep.subr.mxu0 0.0
    %947 = vmatpush1.msra.mxu0 0.0
    %948 = vmatprep.subr.mxu0 0.0
    %949 = vmatpush1.msra.mxu0 0.0
    %950 = vmatprep.subr.mxu0 0.0
    %951 = vmatpush1.msra.mxu0 0.0
    %952 = vmatprep.subr.mxu0 0.0
    %953 = vmatpush1.msra.mxu0 0.0
    %954 = vmatprep.subr.mxu0 0.0
    %955 = vmatpush1.msra.mxu0 0.0
    %956 = vmatprep.subr.mxu0 0.0
    %957 = vmatpush1.msra.mxu0 0.0
    %958 = vmatprep.subr.mxu0 0.0
    %959 = vmatpush1.msra.mxu0 0.0
    %960 = vmatprep.subr.mxu0 0.0
    %961 = vmatpush1.msra.mxu0 0.0
    %962 = vmatprep.subr.mxu0 0.0
    %963 = vmatpush1.msra.mxu0 0.0
    %964 = vmatprep.subr.mxu0 0.0
    %965 = vmatpush1.msra.mxu0 0.0
    %966 = vmatprep.mubr.f32.mxu0 0.0
    %967 = vmatmul.mubr.f32.gmra.mrb[0].mxu0 %v900
    %v968 = vpop.f32.mrb[0].mxu0
    %v969 = vadd.f32 0.0, %v968
    %v970 = vpop.f32.mrb[0].mxu0
    %971 = vdwg.mxu0
    %v972 = vadd.f32 %v896, %v969
    %v973 = vxor.u32 %v972, 2147483648
    %v974 = vmul.f32 %v973, 1.442695
    %v975 = vpow.pop %v974
    %v976 = vadd.f32 %v975, 1.0
    %v977 = vrcp.pop %v976
    %v978 = vmul.f32 1.0, %v977
    %v979 = vtanh.pop %v972
    %v980 = vmul.f32 %v978, %v888
    %982 = vrot.lane.b32.xlu0 %v979, 32
    %v983 = vpop.permute.xlu0 %982
    %v985 = vmul.f32 %v978, %v983
    %987 = vrot.lane.b32.xlu0 %v985, 32
    %v988 = vpop.permute.xlu0 %987
    %v990 = vadd.f32 %v980, %v988
    %v991 = vtanh.pop %v990
    %993 = vrot.lane.b32.xlu0 %v991, 32
    %v994 = vpop.permute.xlu0 %993
    %v996 = vmul.f32 %v978, %v994
    %v997 = vld [vmem:[%s4] sm:$0xff]
    %v998 = vld [vmem:[%s4 + $0x8] sm:$0xff]
    %v999 = vld [vmem:[%s4 + $0x10] sm:$0xff]
    %v1000 = vld [vmem:[%s4 + $0x18] sm:$0xff]
    %v1001 = vld [vmem:[%s5] sm:$0x1]
    %v1003 = vlaneseq
    %v1004 = vshrl.u32 %v1003, 7
    %v1005 = vsub.s32 0, %v1004
    %v1006 = vrot.slane %v1001, %v1005
    %1009 = vrot.lane.b32.xlu0 %v996, 64
    %v1010 = vpop.permute.xlu0 %1009
    %v1011 = vsel %vm184, %v1010, 0
    %1013 = vmatprep.subr.mxu0 0.0
    %1014 = vmatpush1.msra.mxu0 %v997
    %1015 = vmatprep.subr.mxu0 0.0
    %1016 = vmatpush1.msra.mxu0 %v998
    %1017 = vmatprep.subr.mxu0 0.0
    %1018 = vmatpush1.msra.mxu0 %v999
    %1019 = vmatprep.subr.mxu0 0.0
    %1020 = vmatpush1.msra.mxu0 %v1000
    %1021 = vmatprep.subr.mxu0 0.0
    %1022 = vmatpush1.msra.mxu0 0.0
    %1023 = vmatprep.subr.mxu0 0.0
    %1024 = vmatpush1.msra.mxu0 0.0
    %1025 = vmatprep.subr.mxu0 0.0
    %1026 = vmatpush1.msra.mxu0 0.0
    %1027 = vmatprep.subr.mxu0 0.0
    %1028 = vmatpush1.msra.mxu0 0.0
    %1029 = vmatprep.subr.mxu0 0.0
    %1030 = vmatpush1.msra.mxu0 0.0
    %1031 = vmatprep.subr.mxu0 0.0
    %1032 = vmatpush1.msra.mxu0 0.0
    %1033 = vmatprep.subr.mxu0 0.0
    %1034 = vmatpush1.msra.mxu0 0.0
    %1035 = vmatprep.subr.mxu0 0.0
    %1036 = vmatpush1.msra.mxu0 0.0
    %1037 = vmatprep.subr.mxu0 0.0
    %1038 = vmatpush1.msra.mxu0 0.0
    %1039 = vmatprep.subr.mxu0 0.0
    %1040 = vmatpush1.msra.mxu0 0.0
    %1041 = vmatprep.subr.mxu0 0.0
    %1042 = vmatpush1.msra.mxu0 0.0
    %1043 = vmatprep.subr.mxu0 0.0
    %1044 = vmatpush1.msra.mxu0 0.0
    %1045 = vmatprep.subr.mxu0 0.0
    %1046 = vmatpush1.msra.mxu0 0.0
    %1047 = vmatprep.subr.mxu0 0.0
    %1048 = vmatpush1.msra.mxu0 0.0
    %1049 = vmatprep.subr.mxu0 0.0
    %1050 = vmatpush1.msra.mxu0 0.0
    %1051 = vmatprep.subr.mxu0 0.0
    %1052 = vmatpush1.msra.mxu0 0.0
    %1053 = vmatprep.subr.mxu0 0.0
    %1054 = vmatpush1.msra.mxu0 0.0
    %1055 = vmatprep.subr.mxu0 0.0
    %1056 = vmatpush1.msra.mxu0 0.0
    %1057 = vmatprep.subr.mxu0 0.0
    %1058 = vmatpush1.msra.mxu0 0.0
    %1059 = vmatprep.subr.mxu0 0.0
    %1060 = vmatpush1.msra.mxu0 0.0
    %1061 = vmatprep.subr.mxu0 0.0
    %1062 = vmatpush1.msra.mxu0 0.0
    %1063 = vmatprep.subr.mxu0 0.0
    %1064 = vmatpush1.msra.mxu0 0.0
    %1065 = vmatprep.subr.mxu0 0.0
    %1066 = vmatpush1.msra.mxu0 0.0
    %1067 = vmatprep.subr.mxu0 0.0
    %1068 = vmatpush1.msra.mxu0 0.0
    %1069 = vmatprep.subr.mxu0 0.0
    %1070 = vmatpush1.msra.mxu0 0.0
    %1071 = vmatprep.subr.mxu0 0.0
    %1072 = vmatpush1.msra.mxu0 0.0
    %1073 = vmatprep.subr.mxu0 0.0
    %1074 = vmatpush1.msra.mxu0 0.0
    %1075 = vmatprep.subr.mxu0 0.0
    %1076 = vmatpush1.msra.mxu0 0.0
    %1077 = vmatprep.mubr.f32.mxu0 0.0
    %1078 = vmatmul.mubr.f32.gmra.mrb[0].mxu0 %v1011
    %v1079 = vpop.f32.mrb[0].mxu0
    %v1080 = vadd.f32 %v1006, %v1079
    %v1081 = vpop.f32.mrb[0].mxu0
    %1082 = vdwg.mxu0
    %vm1083 = vcmask 64512
    %v1084 = vsel %vm1083, %v1080, -inf
    %1085 = vmax.xlane.f32.xlu0 %v1084
    %v1086 = vpop.xlane.xlu0 %1085
    %v1087 = vsub.f32 %v1080, %v1086
    %v1088 = vmul.f32 %v1087, 1.442695
    %v1089 = vpow.pop %v1088
    %v1090 = vsel %vm1083, %v1089, 0.0
    %1091 = vadd.xlane.f32.xlu0 %v1090
    %v1092 = vpop.xlane.xlu0 %1091
    %v1093 = vrcp.pop %v1092
    %v1094 = vmul.f32 %v1089, %v1093
    %1095 = vst.msk [vmem:[#allocation3] sm:$0xff] %vm1083, %v1094
    // Predicated region
    $region26: #{py_model_forward.1} parent=1 // pred_check
      _
    $region27: #{py_model_forward.1} parent=1 // pred_check_branch
      %1097 = sbr.rel (0) target = $region29
    $region28: #{py_model_forward.1} parent=1 // pred_region
      %s1099 = ssub.s32 128, 128
      %1100 = vsyncadd [#allocation4], %s1099
      %s1102 = sshll.u32 [#allocation3], 4
      %s1103 = int_to_ptr.vmem [resolvable:$true] %s1102
      %1105 = dma.vmem_to_hbm [thread:$0]  %s1103, 128, %s6, [#allocation4]
    $region29: #{py_model_forward.1} parent=1 // pred_fallthru
      _
    // Predicated region
    $region30: #{py_model_forward.1} parent=1 // pred_check
      _
    $region31: #{py_model_forward.1} parent=1 // pred_check_branch
      %1107 = sbr.rel (0) target = $region33
    $region32: #{py_model_forward.1} parent=1 // pred_region
      %1108 = dma.done [#allocation4], 128
    $region33: #{py_model_forward.1} parent=1 // pred_fallthru
      _
    %1109 = vsyncpa [#allocation4], 1

</llo_original>
